<compile_context>
chip_gen: v6e
topology: v6e:2x2x1
jax: 0.10.0
libtpu: 0.0.40
codegen_flags: <defaults>
</compile_context>

<pallas_src>
import functools

import jax
import jax.numpy as jnp
import numpy as np
from jax.experimental import pallas as pl
from jax.experimental.pallas import tpu as pltpu


def _round_up(a: int, b: int) -> int:
    return (a + b - 1) // b * b


def router_kernel(x_ref, w_ref, b_ref, noise_ref, probs_ref, idx_ref, *,
                  top_k, n_experts, e_pad):
    # Fused route/noise linear: single MXU pass, f32 accumulation.
    fused = jnp.dot(x_ref[...], w_ref[...],
                    preferred_element_type=jnp.float32) + b_ref[...]
    logits = fused[:, :e_pad]            # 128-lane-aligned slices
    noise_logits = fused[:, e_pad:]

    # softplus(z) = log(1 + exp(z)), numerically stable (EUP work).
    softplus = jnp.logaddexp(noise_logits, 0.0)
    noisy = logits + noise_ref[...].astype(jnp.float32) * softplus

    neg_inf = jnp.float32(-jnp.inf)
    col_ids = jax.lax.broadcasted_iota(jnp.int32, noisy.shape, dimension=1)
    if e_pad != n_experts:
        # mask the lane-padding experts so they are never selected
        noisy = jnp.where(col_ids < n_experts, noisy, neg_inf)

    # Iterative top-k (top_k is a small static int -> unrolled at trace time),
    # lowest-index tie-break matching jax.lax.top_k / torch.topk.
    work = noisy
    idx_cols = []
    for _ in range(top_k):
        m = jnp.max(work, axis=-1, keepdims=True)
        idx = jnp.min(jnp.where(work == m, col_ids, e_pad),
                      axis=-1, keepdims=True)
        work = jnp.where(col_ids == idx, neg_inf, work)
        idx_cols.append(idx)
    # NOTE: (tm, top_k) output is a masked partial store; per review this is
    # hidden under the x DMA here -- revisit only if the bundle shows it.
    idx_ref[...] = jnp.concatenate(idx_cols, axis=-1).astype(jnp.int32)

    # Selected entries were overwritten with -inf, padded lanes stay -inf, so
    # the kept mask is exactly `work < noisy` (no bookkeeping in the loop).
    keep = work < noisy

    # sparse softmax: exact zeros outside the kept (top-k) entries.
    masked_max = jnp.max(jnp.where(keep, noisy, neg_inf), axis=-1, keepdims=True)
    p = jnp.where(keep, jnp.exp(noisy - masked_max), 0.0)
    denom = jnp.sum(p, axis=-1, keepdims=True)
    probs_ref[...] = p / denom


def fuse_router_params(w_route, b_route, w_noise, b_noise, *,
                       dtype=jnp.float32):
    """Builds the fused, lane-padded [route | noise] weight/bias ONCE.

    w_* are torch-Linear shaped (n_experts, n_embed). `dtype` is the explicit
    matmul precision policy (f32 default; bf16 halves the x/W HBM traffic).
    Call this outside the per-forward path.
    """
    n_experts, n_embed = w_route.shape
    e_pad = _round_up(n_experts, 128)
    wt = jnp.zeros((n_embed, 2 * e_pad), dtype=dtype)
    wt = wt.at[:, :n_experts].set(w_route.T.astype(dtype))
    wt = wt.at[:, e_pad:e_pad + n_experts].set(w_noise.T.astype(dtype))
    bt = jnp.zeros((1, 2 * e_pad), dtype=jnp.float32)
    bt = bt.at[:, :n_experts].set(b_route.astype(jnp.float32))
    bt = bt.at[:, e_pad:e_pad + n_experts].set(b_noise.astype(jnp.float32))
    return wt, bt, n_experts


def router_forward(x, wt, bt, noise, *, top_k, n_experts,
                   tm_max=512, vmem_budget_bytes=40 * (1 << 20)):
    """x: (..., n_embed); (wt, bt) from fuse_router_params.

    noise is an externally drawn standard-normal tensor of shape
    (..., n_experts); it is scaled by softplus(noise_logits) in-kernel.
    vmem_budget_bytes should stay <= ~44 MiB so the derived limit fits v7x's
    64 MiB physical VMEM with headroom (v5e/v6e have 128 MiB).
    """
    if not (0 < top_k <= n_experts):
        raise ValueError(f"top_k={top_k} must be in (0, n_experts={n_experts}]")

    orig_lead = x.shape[:-1]
    n_embed = x.shape[-1]
    two_e_pad = wt.shape[1]
    e_pad = two_e_pad // 2

    x2 = x.reshape(-1, n_embed)
    if x2.dtype != wt.dtype:
        x2 = x2.astype(wt.dtype)       # explicit precision policy (follow weights)
    n_tokens = x2.shape[0]

    noise2 = noise.reshape(-1, n_experts)
    if e_pad != n_experts:
        # lane-pad the expert axis (small: e_pad*4 B/token << n_embed*4 B/token)
        noise2 = jnp.pad(noise2, ((0, 0), (0, e_pad - n_experts)))

    x_isz = jnp.dtype(x2.dtype).itemsize
    n_isz = jnp.dtype(noise2.dtype).itemsize
    w_isz = jnp.dtype(wt.dtype).itemsize

    # VMEM accounting: x / noise / probs / idx double-buffered by the pipeline,
    # fused weight + bias single-buffered (constant block index, Buffered(1)).
    fixed_bytes = n_embed * two_e_pad * w_isz + 2 * two_e_pad * 4
    per_token_bytes = 2 * (n_embed * x_isz + e_pad * n_isz + e_pad * 4 + top_k * 4)
    tm_budget = max(8, ((vmem_budget_bytes - fixed_bytes) // per_token_bytes) // 8 * 8)
    tm = int(min(tm_max, _round_up(n_tokens, 8), tm_budget))
    grid = pl.cdiv(n_tokens, tm)

    need = fixed_bytes + tm * per_token_bytes
    vmem_limit = int(min(max(need + need // 4 + (2 << 20), 32 << 20), 56 << 20))

    flops = 2 * n_tokens * n_embed * two_e_pad
    transcendentals = 3 * n_tokens * e_pad  # softplus (exp+log) + softmax exp
    bytes_accessed = (n_tokens * n_embed * x_isz            # x read
                      + n_embed * two_e_pad * w_isz         # fused W read
                      + 2 * two_e_pad * 4                   # bias read
                      + n_tokens * e_pad * n_isz            # noise read
                      + n_tokens * e_pad * 4                # probs write
                      + n_tokens * top_k * 4)               # idx write

    kern = functools.partial(router_kernel, top_k=top_k,
                             n_experts=n_experts, e_pad=e_pad)
    probs, idx = pl.pallas_call(
        kern,
        out_shape=(
            jax.ShapeDtypeStruct((n_tokens, e_pad), jnp.float32),
            jax.ShapeDtypeStruct((n_tokens, top_k), jnp.int32),
        ),
        grid=(grid,),
        in_specs=[
            pl.BlockSpec((tm, n_embed), lambda i: (i, 0)),            # x tile
            pl.BlockSpec((n_embed, two_e_pad), lambda i: (0, 0),
                         pipeline_mode=pl.Buffered(1)),               # W (resident, 1 buf)
            pl.BlockSpec((1, two_e_pad), lambda i: (0, 0),
                         pipeline_mode=pl.Buffered(1)),               # b (resident, 1 buf)
            pl.BlockSpec((tm, e_pad), lambda i: (i, 0)),              # std-normal noise
        ],
        out_specs=(
            pl.BlockSpec((tm, e_pad), lambda i: (i, 0)),              # probs (lane-dense)
            pl.BlockSpec((tm, top_k), lambda i: (i, 0)),              # top-k indices
        ),
        compiler_params=pltpu.CompilerParams(
            dimension_semantics=("parallel",),                        # megacore on v7x
            vmem_limit_bytes=vmem_limit),
        cost_estimate=pl.CostEstimate(flops=flops,
                                      transcendentals=transcendentals,
                                      bytes_accessed=bytes_accessed),
    )(x2, wt, bt, noise2)

    probs = probs[:, :n_experts].reshape(*orig_lead, n_experts)
    idx = idx.reshape(*orig_lead, top_k)
    return probs, idx


def router_reference(x, w_route, b_route, w_noise, b_noise, noise, *, top_k):
    logits = x @ w_route.T + b_route
    noise_logits = x @ w_noise.T + b_noise
    noisy = logits + noise * jax.nn.softplus(noise_logits)
    top_vals, top_idx = jax.lax.top_k(noisy, top_k)
    keep = jnp.any(
        jnp.arange(noisy.shape[-1])[None, None, :, None] == top_idx[..., None, :],
        axis=-1)
    sparse = jnp.where(keep, noisy, -jnp.inf)
    return jax.nn.softmax(sparse, axis=-1), top_idx


if __name__ == "__main__":
    B, T, n_embed, n_experts, top_k = 2, 8, 32, 8, 2

    key = jax.random.PRNGKey(0)
    kx, kwr, kbr, kwn, kbn, knoise = jax.random.split(key, 6)

    x = jax.random.normal(kx, (B, T, n_embed), dtype=jnp.float32)
    # deterministic synthetic parameters (torch Linear shapes: (out, in))
    w_route = jax.random.normal(kwr, (n_experts, n_embed), dtype=jnp.float32) * 0.1
    b_route = jax.random.normal(kbr, (n_experts,), dtype=jnp.float32) * 0.1
    w_noise = jax.random.normal(kwn, (n_experts, n_embed), dtype=jnp.float32) * 0.1
    b_noise = jax.random.normal(kbn, (n_experts,), dtype=jnp.float32) * 0.1
    # TODO(synk): torch.randn_like draws cannot be bit-reproduced; standard
    # normal noise is drawn here (glue) and scaled by softplus in-kernel.
    noise = jax.random.normal(knoise, (B, T, n_experts), dtype=jnp.float32)

    # Fused weight/bias built ONCE (hoisted out of the per-call path).
    # Use dtype=jnp.bfloat16 here for the bf16 bandwidth win on real models.
    wt, bt, _ = fuse_router_params(w_route, b_route, w_noise, b_noise,
                                   dtype=jnp.float32)

    probs, idx = router_forward(x, wt, bt, noise, top_k=top_k,
                                n_experts=n_experts)
    jax.block_until_ready((probs, idx))

    ref_probs, ref_idx = router_reference(x, w_route, b_route, w_noise, b_noise,
                                          noise, top_k=top_k)
    np.testing.assert_allclose(np.asarray(probs), np.asarray(ref_probs),
                               atol=1e-5, rtol=1e-5)
    np.testing.assert_array_equal(np.asarray(idx), np.asarray(ref_idx))

    print("KERNEL_OK")
</pallas_src>

<mosaic_0001>
module attributes {stable_mosaic.version = 11 : i64} {
  func.func @router_kernel(%arg0: i32, %arg1: memref<16x32xf32, #tpu.memory_space<vmem>>, %arg2: memref<32x256xf32, #tpu.memory_space<vmem>>, %arg3: memref<1x256xf32, #tpu.memory_space<vmem>>, %arg4: memref<16x128xf32, #tpu.memory_space<vmem>>, %arg5: memref<16x128xf32, #tpu.memory_space<vmem>>, %arg6: memref<16x2xi32, #tpu.memory_space<vmem>>) attributes {dimension_semantics = [#tpu.dimension_semantics<parallel>], iteration_bounds = array<i64: 1>, scalar_prefetch = 0 : i64, scratch_operands = 0 : i64, tpu.core_type = #tpu.core_type<tc>, window_params = [{transform_indices = @transform_0, window_bounds = array<i64: 16, 32>}, {pipeline_mode = #tpu.pipeline_mode<synchronous>, transform_indices = @transform_1, window_bounds = array<i64: 32, 256>}, {pipeline_mode = #tpu.pipeline_mode<synchronous>, transform_indices = @transform_2, window_bounds = array<i64: 1, 256>}, {transform_indices = @transform_3, window_bounds = array<i64: 16, 128>}, {transform_indices = @transform_4, window_bounds = array<i64: 16, 128>}, {transform_indices = @transform_5, window_bounds = array<i64: 16, 2>}]} {
    %c0 = arith.constant 0 : index
    %c0_0 = arith.constant 0 : index
    %0 = vector.load %arg1[%c0, %c0_0] : memref<16x32xf32, #tpu.memory_space<vmem>>, vector<16x32xf32>
    %c0_1 = arith.constant 0 : index
    %c0_2 = arith.constant 0 : index
    %1 = vector.load %arg2[%c0_1, %c0_2] : memref<32x256xf32, #tpu.memory_space<vmem>>, vector<32x256xf32>
    %cst = arith.constant dense<0.000000e+00> : vector<16x256xf32>
    %2 = tpu.matmul %0, %1, %cst {dimension_numbers = #tpu.dot_dimension_numbers<[1], [0], [0], [1], [0, 0, 1, 1], [], []>} : vector<16x32xf32>, vector<32x256xf32>, vector<16x256xf32> -> vector<16x256xf32>
    %c0_3 = arith.constant 0 : index
    %c0_4 = arith.constant 0 : index
    %3 = vector.load %arg3[%c0_3, %c0_4] : memref<1x256xf32, #tpu.memory_space<vmem>>, vector<1x256xf32>
    %4 = vector.broadcast %3 : vector<1x256xf32> to vector<16x256xf32>
    %5 = arith.addf %2, %4 : vector<16x256xf32>
    %6 = vector.extract_strided_slice %5 {offsets = [0, 0], sizes = [16, 128], strides = [1, 1]} : vector<16x256xf32> to vector<16x128xf32>
    %7 = vector.extract_strided_slice %5 {offsets = [0, 128], sizes = [16, 128], strides = [1, 1]} : vector<16x256xf32> to vector<16x128xf32>
    %cst_5 = arith.constant 0.000000e+00 : f32
    %8 = vector.broadcast %cst_5 : f32 to vector<16x128xf32>
    %9 = arith.maximumf %7, %8 : vector<16x128xf32>
    %10 = vector.broadcast %cst_5 : f32 to vector<16x128xf32>
    %11 = arith.subf %7, %10 : vector<16x128xf32>
    %12 = arith.cmpf one, %11, %11 : vector<16x128xf32>
    %13 = vector.broadcast %cst_5 : f32 to vector<16x128xf32>
    %14 = arith.addf %7, %13 : vector<16x128xf32>
    %15 = math.absf %11 : vector<16x128xf32>
    %cst_6 = arith.constant 0.000000e+00 : f32
    %16 = vector.broadcast %cst_6 : f32 to vector<16x128xf32>
    %17 = arith.subf %16, %15 : vector<16x128xf32>
    %18 = math.exp %17 : vector<16x128xf32>
    %19 = math.log1p %18 : vector<16x128xf32>
    %20 = arith.addf %9, %19 : vector<16x128xf32>
    %21 = arith.select %12, %14, %20 : vector<16x128xi1>, vector<16x128xf32>
    %c0_7 = arith.constant 0 : index
    %c0_8 = arith.constant 0 : index
    %22 = vector.load %arg4[%c0_7, %c0_8] : memref<16x128xf32, #tpu.memory_space<vmem>>, vector<16x128xf32>
    %23 = arith.mulf %22, %21 : vector<16x128xf32>
    %24 = arith.addf %6, %23 : vector<16x128xf32>
    %25 = tpu.iota {dimensions = array<i32: 1>} : vector<16x128xi32>
    %c8_i32 = arith.constant 8 : i32
    %26 = vector.broadcast %c8_i32 : i32 to vector<16x128xi32>
    %27 = arith.cmpi slt, %25, %26 : vector<16x128xi32>
    %cst_9 = arith.constant 0xFF800000 : f32
    %28 = vector.broadcast %cst_9 : f32 to vector<16x128xf32>
    %29 = arith.select %27, %24, %28 : vector<16x128xi1>, vector<16x128xf32>
    %cst_10 = arith.constant dense<0xFF800000> : vector<16xf32>
    %30 = vector.multi_reduction <maximumf>, %29, %cst_10 [1] : vector<16x128xf32> to vector<16xf32>
    %31 = vector.shape_cast %30 : vector<16xf32> to vector<16x1xf32>
    %32 = vector.broadcast %31 : vector<16x1xf32> to vector<16x128xf32>
    %33 = arith.cmpf oeq, %29, %32 : vector<16x128xf32>
    %c128_i32 = arith.constant 128 : i32
    %34 = vector.broadcast %c128_i32 : i32 to vector<16x128xi32>
    %35 = arith.select %33, %25, %34 : vector<16x128xi1>, vector<16x128xi32>
    %cst_11 = arith.constant dense<2147483647> : vector<16xi32>
    %36 = vector.multi_reduction <minsi>, %35, %cst_11 [1] : vector<16x128xi32> to vector<16xi32>
    %37 = vector.shape_cast %36 : vector<16xi32> to vector<16x1xi32>
    %38 = vector.broadcast %37 : vector<16x1xi32> to vector<16x128xi32>
    %39 = arith.cmpi eq, %25, %38 : vector<16x128xi32>
    %cst_12 = arith.constant 0xFF800000 : f32
    %40 = vector.broadcast %cst_12 : f32 to vector<16x128xf32>
    %41 = arith.select %39, %40, %29 : vector<16x128xi1>, vector<16x128xf32>
    %cst_13 = arith.constant dense<0xFF800000> : vector<16xf32>
    %42 = vector.multi_reduction <maximumf>, %41, %cst_13 [1] : vector<16x128xf32> to vector<16xf32>
    %43 = vector.shape_cast %42 : vector<16xf32> to vector<16x1xf32>
    %44 = vector.broadcast %43 : vector<16x1xf32> to vector<16x128xf32>
    %45 = arith.cmpf oeq, %41, %44 : vector<16x128xf32>
    %c128_i32_14 = arith.constant 128 : i32
    %46 = vector.broadcast %c128_i32_14 : i32 to vector<16x128xi32>
    %47 = arith.select %45, %25, %46 : vector<16x128xi1>, vector<16x128xi32>
    %cst_15 = arith.constant dense<2147483647> : vector<16xi32>
    %48 = vector.multi_reduction <minsi>, %47, %cst_15 [1] : vector<16x128xi32> to vector<16xi32>
    %49 = vector.shape_cast %48 : vector<16xi32> to vector<16x1xi32>
    %50 = vector.broadcast %49 : vector<16x1xi32> to vector<16x128xi32>
    %51 = arith.cmpi eq, %25, %50 : vector<16x128xi32>
    %cst_16 = arith.constant 0xFF800000 : f32
    %52 = vector.broadcast %cst_16 : f32 to vector<16x128xf32>
    %53 = arith.select %51, %52, %41 : vector<16x128xi1>, vector<16x128xf32>
    %54 = tpu.concatenate %37, %49 in 1 : vector<16x1xi32>, vector<16x1xi32> -> vector<16x2xi32>
    %c0_17 = arith.constant 0 : index
    %c0_18 = arith.constant 0 : index
    %55 = vector.load %arg6[%c0_17, %c0_18] : memref<16x2xi32, #tpu.memory_space<vmem>>, vector<16x2xi32>
    tpu.vector_store %arg6[%c0_17, %c0_18], %54 {strides = array<i32>} : memref<16x2xi32, #tpu.memory_space<vmem>>, vector<16x2xi32>,
    %56 = arith.cmpf olt, %53, %29 : vector<16x128xf32>
    %cst_19 = arith.constant 0xFF800000 : f32
    %57 = vector.broadcast %cst_19 : f32 to vector<16x128xf32>
    %58 = arith.select %56, %29, %57 : vector<16x128xi1>, vector<16x128xf32>
    %cst_20 = arith.constant dense<0xFF800000> : vector<16xf32>
    %59 = vector.multi_reduction <maximumf>, %58, %cst_20 [1] : vector<16x128xf32> to vector<16xf32>
    %60 = vector.shape_cast %59 : vector<16xf32> to vector<16x1xf32>
    %61 = vector.broadcast %60 : vector<16x1xf32> to vector<16x128xf32>
    %62 = arith.subf %29, %61 : vector<16x128xf32>
    %63 = math.exp %62 : vector<16x128xf32>
    %cst_21 = arith.constant 0.000000e+00 : f32
    %64 = vector.broadcast %cst_21 : f32 to vector<16x128xf32>
    %65 = arith.select %56, %63, %64 : vector<16x128xi1>, vector<16x128xf32>
    %cst_22 = arith.constant dense<0.000000e+00> : vector<16xf32>
    %66 = vector.multi_reduction <add>, %65, %cst_22 [1] : vector<16x128xf32> to vector<16xf32>
    %67 = vector.shape_cast %66 : vector<16xf32> to vector<16x1xf32>
    %68 = vector.broadcast %67 : vector<16x1xf32> to vector<16x128xf32>
    %69 = arith.divf %65, %68 : vector<16x128xf32>
    %c0_23 = arith.constant 0 : index
    %c0_24 = arith.constant 0 : index
    %70 = vector.load %arg5[%c0_23, %c0_24] : memref<16x128xf32, #tpu.memory_space<vmem>>, vector<16x128xf32>
    tpu.vector_store %arg5[%c0_23, %c0_24], %69 {strides = array<i32>} : memref<16x128xf32, #tpu.memory_space<vmem>>, vector<16x128xf32>,
    return
  }
  func.func @transform_0(%arg0: i32) -> (i32, i32) {
    %c0_i32 = arith.constant 0 : i32
    %c0_i32_0 = arith.constant 0 : i32
    return %arg0, %c0_i32 : i32, i32
  }
  func.func @transform_1(%arg0: i32) -> (i32, i32) {
    %c0_i32 = arith.constant 0 : i32
    %c0_i32_0 = arith.constant 0 : i32
    %c0_i32_1 = arith.constant 0 : i32
    return %c0_i32, %c0_i32_0 : i32, i32
  }
  func.func @transform_2(%arg0: i32) -> (i32, i32) {
    %c0_i32 = arith.constant 0 : i32
    %c0_i32_0 = arith.constant 0 : i32
    %c0_i32_1 = arith.constant 0 : i32
    return %c0_i32, %c0_i32_0 : i32, i32
  }
  func.func @transform_3(%arg0: i32) -> (i32, i32) {
    %c0_i32 = arith.constant 0 : i32
    %c0_i32_0 = arith.constant 0 : i32
    return %arg0, %c0_i32 : i32, i32
  }
  func.func @transform_4(%arg0: i32) -> (i32, i32) {
    %c0_i32 = arith.constant 0 : i32
    %c0_i32_0 = arith.constant 0 : i32
    return %arg0, %c0_i32 : i32, i32
  }
  func.func @transform_5(%arg0: i32) -> (i32, i32) {
    %c0_i32 = arith.constant 0 : i32
    %c0_i32_0 = arith.constant 0 : i32
    return %arg0, %c0_i32 : i32, i32
  }
}

</mosaic_0001>

<llo_original>
// kernel: tpu_custom_call.1
$region0: #{tpu_custom_call.1}
  #allocation0 [shape = 'u32[]', space=smem, size = 0x4, offset = 0x4, fixed_abs, tag = 'smem constant byte address 0x4 - core index']
  #allocation1 [shape = 'u32[144,128]{1,0:T(1,128)}', space=vmem, size = 0x12000, scoped, tag = 'internal scratch']
  %s0 = inlined_call_operand.hbm [shape: f32[16,32], index: 0, kind: input, shape index: {}]
  %s1 = inlined_call_operand.hbm [shape: f32[32,256], index: 1, kind: input, shape index: {}]
  %s2 = inlined_call_operand.vmem [shape: f32[1,256], index: 2, kind: input, shape index: {}]
  %s3 = inlined_call_operand.hbm [shape: f32[16,128], index: 3, kind: input, shape index: {}]
  %s4 = inlined_call_operand.hbm [shape: f32[16,128], index: 4, kind: output, shape index: {0}]
  %s5 = inlined_call_operand.vmem [shape: s32[16,2], index: 5, kind: output, shape index: {1}]
  %6 = xla_tuple %s4, %s5
  %s7 = sld [smem:[#allocation0]]
  $region46: #{tpu_custom_call.1} parent=0
    _
  %s9 = ssub.s32 1, %s7
  %s10 = scalar_select 0, %s9, %s7
  $region1: #{tpu_custom_call.1} parent=0
    #allocation2 [shape = 'u8[8192]{0}', space=vmem, size = 0x2000, scoped, tag = 'input window, operand 0, single buffered']
    #allocation3 [shape = 's32[1]{0}', space=sflag, size = 0x4, scoped, tag = 'scoped memory for tpu_custom_call.1']
    #allocation4 [shape = 's32[1]{0}', space=sflag, size = 0x4, scoped, tag = 'scoped memory for tpu_custom_call.1']
    #allocation5 [shape = 'u8[32768]{0}', space=vmem, size = 0x8000, scoped, tag = 'input window, operand 1, single buffered']
    #allocation6 [shape = 's32[1]{0}', space=sflag, size = 0x4, scoped, tag = 'scoped memory for tpu_custom_call.1']
    #allocation7 [shape = 'u8[8192]{0}', space=vmem, size = 0x2000, scoped, tag = 'input window, operand 3, single buffered']
    #allocation8 [shape = 'u8[8192]{0}', space=vmem, size = 0x2000, scoped, tag = 'output window, operand 0, single buffered']
    %11 = vsyncpa [#allocation3], 0
    %12 = vsyncpa [#allocation6], 0
    %13 = vsyncpa [#allocation4], 0
    // Predicated region
    $region2: #{tpu_custom_call.1} parent=1 // pred_check
      _
    $region3: #{tpu_custom_call.1} parent=1 // pred_check_branch
      %15 = sbr.rel (0) target = $region5
    $region4: #{tpu_custom_call.1} parent=1 // pred_region
      %s17 = ssub.s32 256, 256
      %18 = vsyncadd [#allocation3], %s17
      %s19 = sshll.u32 [#allocation2], 4
      %s20 = int_to_ptr.vmem [resolvable:$true] %s19
      %25 = dma.hbm_to_vmem [thread:$0]  %s0, 256, %s20, [#allocation3], 128, 128, 8
    $region5: #{tpu_custom_call.1} parent=1 // pred_fallthru
      _
    // Predicated region
    $region6: #{tpu_custom_call.1} parent=1 // pred_check
      _
    $region7: #{tpu_custom_call.1} parent=1 // pred_check_branch
      %27 = sbr.rel (0) target = $region9
    $region8: #{tpu_custom_call.1} parent=1 // pred_region
      %s29 = ssub.s32 1024, 1024
      %30 = vsyncadd [#allocation6], %s29
      %s31 = sshll.u32 [#allocation5], 4
      %s32 = int_to_ptr.vmem [resolvable:$true] %s31
      %37 = dma.hbm_to_vmem [thread:$0]  %s1, 1024, %s32, [#allocation6], 256, 256, 16
    $region9: #{tpu_custom_call.1} parent=1 // pred_fallthru
      _
    // Predicated region
    $region10: #{tpu_custom_call.1} parent=1 // pred_check
      _
    $region11: #{tpu_custom_call.1} parent=1 // pred_check_branch
      %39 = sbr.rel (0) target = $region13
    $region12: #{tpu_custom_call.1} parent=1 // pred_region
      _
    $region13: #{tpu_custom_call.1} parent=1 // pred_fallthru
      _
    // Predicated region
    $region14: #{tpu_custom_call.1} parent=1 // pred_check
      _
    $region15: #{tpu_custom_call.1} parent=1 // pred_check_branch
      %41 = sbr.rel (0) target = $region17
    $region16: #{tpu_custom_call.1} parent=1 // pred_region
      %s43 = ssub.s32 256, 256
      %44 = vsyncadd [#allocation6], %s43
      %s45 = sshll.u32 [#allocation7], 4
      %s46 = int_to_ptr.vmem [resolvable:$true] %s45
      %51 = dma.hbm_to_vmem [thread:$0]  %s3, 256, %s46, [#allocation6], 128, 128, 8
    $region17: #{tpu_custom_call.1} parent=1 // pred_fallthru
      _
    // Predicated region
    $region18: #{tpu_custom_call.1} parent=1 // pred_check
      _
    $region19: #{tpu_custom_call.1} parent=1 // pred_check_branch
      %53 = sbr.rel (0) target = $region21
    $region20: #{tpu_custom_call.1} parent=1 // pred_region
      %54 = dma.done [#allocation3], 256
    $region21: #{tpu_custom_call.1} parent=1 // pred_fallthru
      _
    // Predicated region
    $region22: #{tpu_custom_call.1} parent=1 // pred_check
      _
    $region23: #{tpu_custom_call.1} parent=1 // pred_check_branch
      %56 = sbr.rel (0) target = $region25
    $region24: #{tpu_custom_call.1} parent=1 // pred_region
      %57 = dma.done [#allocation6], 1024
    $region25: #{tpu_custom_call.1} parent=1 // pred_fallthru
      _
    // Predicated region
    $region26: #{tpu_custom_call.1} parent=1 // pred_check
      _
    $region27: #{tpu_custom_call.1} parent=1 // pred_check_branch
      %59 = sbr.rel (0) target = $region29
    $region28: #{tpu_custom_call.1} parent=1 // pred_region
      %60 = dma.done [#allocation6], 256
    $region29: #{tpu_custom_call.1} parent=1 // pred_fallthru
      _
    %v61 = vld [vmem:[#allocation2] sm:$0xff]
    %v62 = vld [vmem:[#allocation2 + $0x8] sm:$0xff]
    %v63 = vld [vmem:[#allocation5] sm:$0xff]
    %v64 = vld [vmem:[#allocation5 + $0x8] sm:$0xff]
    %v65 = vld [vmem:[#allocation5 + $0x10] sm:$0xff]
    %v66 = vld [vmem:[#allocation5 + $0x18] sm:$0xff]
    %v67 = vld [vmem:[#allocation5 + $0x20] sm:$0xff]
    %v68 = vld [vmem:[#allocation5 + $0x28] sm:$0xff]
    %v69 = vld [vmem:[#allocation5 + $0x30] sm:$0xff]
    %v70 = vld [vmem:[#allocation5 + $0x38] sm:$0xff]
    %v71 = vld [vmem:[%s2] sm:$0x3]
    %v73 = vlaneseq
    %v74 = vshrl.u32 %v73, 7
    %v75 = vsub.s32 0, %v74
    %v76 = vrot.slane %v71, %v75
    %v77 = vlaneseq
    %v78 = vshrl.u32 %v77, 7
    %v79 = vsub.s32 1, %v78
    %v80 = vrot.slane %v71, %v79
    %vm83 = vcmask 261120
    %v85 = vsel %vm83, %v61, 0
    %v88 = vsel %vm83, %v62, 0
    %90 = vmatprep.subr.mxu0 0.0
    %91 = vmatpush1.msra.mxu0 0.0
    %92 = vmatprep.subr.mxu0 0.0
    %93 = vmatpush1.msra.mxu0 0.0
    %94 = vmatprep.subr.mxu0 0.0
    %95 = vmatpush1.msra.mxu0 0.0
    %96 = vmatprep.subr.mxu0 0.0
    %97 = vmatpush1.msra.mxu0 0.0
    %98 = vmatprep.subr.mxu0 0.0
    %99 = vmatpush1.msra.mxu0 0.0
    %100 = vmatprep.subr.mxu0 0.0
    %101 = vmatpush1.msra.mxu0 0.0
    %102 = vmatprep.subr.mxu0 0.0
    %103 = vmatpush1.msra.mxu0 0.0
    %104 = vmatprep.subr.mxu0 0.0
    %105 = vmatpush1.msra.mxu0 0.0
    %106 = vmatprep.subr.mxu0 0.0
    %107 = vmatpush1.msra.mxu0 0.0
    %108 = vmatprep.subr.mxu0 0.0
    %109 = vmatpush1.msra.mxu0 0.0
    %110 = vmatprep.subr.mxu0 0.0
    %111 = vmatpush1.msra.mxu0 0.0
    %112 = vmatprep.subr.mxu0 0.0
    %113 = vmatpush1.msra.mxu0 0.0
    %114 = vmatprep.subr.mxu0 %v70
    %115 = vmatpush1.msra.mxu0 %v69
    %116 = vmatprep.subr.mxu0 %v68
    %117 = vmatpush1.msra.mxu0 %v67
    %118 = vmatprep.subr.mxu0 %v66
    %119 = vmatpush1.msra.mxu0 %v65
    %120 = vmatprep.subr.mxu0 %v64
    %121 = vmatpush1.msra.mxu0 %v63
    %122 = vmatprep.subr.mxu0 0.0
    %123 = vmatpush2.msra.mxu0 0.0
    %124 = vmatprep.subr.mxu0 0.0
    %125 = vmatpush2.msra.mxu0 0.0
    %126 = vmatprep.subr.mxu0 0.0
    %127 = vmatpush2.msra.mxu0 0.0
    %128 = vmatprep.subr.mxu0 0.0
    %129 = vmatpush2.msra.mxu0 0.0
    %130 = vmatprep.subr.mxu0 0.0
    %131 = vmatpush2.msra.mxu0 0.0
    %132 = vmatprep.subr.mxu0 0.0
    %133 = vmatpush2.msra.mxu0 0.0
    %134 = vmatprep.subr.mxu0 0.0
    %135 = vmatpush2.msra.mxu0 0.0
    %136 = vmatprep.subr.mxu0 0.0
    %137 = vmatpush2.msra.mxu0 0.0
    %138 = vmatprep.subr.mxu0 0.0
    %139 = vmatpush2.msra.mxu0 0.0
    %140 = vmatprep.subr.mxu0 0.0
    %141 = vmatpush2.msra.mxu0 0.0
    %142 = vmatprep.subr.mxu0 0.0
    %143 = vmatpush2.msra.mxu0 0.0
    %144 = vmatprep.subr.mxu0 0.0
    %145 = vmatpush2.msra.mxu0 0.0
    %146 = vmatprep.subr.mxu0 0.0
    %147 = vmatpush2.msra.mxu0 0.0
    %148 = vmatprep.subr.mxu0 0.0
    %149 = vmatpush2.msra.mxu0 0.0
    %150 = vmatprep.subr.mxu0 0.0
    %151 = vmatpush2.msra.mxu0 0.0
    %152 = vmatprep.subr.mxu0 0.0
    %153 = vmatpush2.msra.mxu0 0.0
    %154 = vmatprep.mubr.f32.mxu0 0.0
    %155 = vmatmul.mubr.f32.gmra.mxu0 %v85
    %v156 = vpop.f32.mrf.mxu0
    %v157 = vadd.f32 %v76, %v156
    %v158 = vpop.f32.mrf.mxu0
    %v159 = vadd.f32 %v80, %v158
    %160 = vmatprep.mubr.f32.mxu0 0.0
    %161 = vmatmul.mubr.f32.gmra.mxu0 %v88
    %v162 = vpop.f32.mrf.mxu0
    %v163 = vadd.f32 %v76, %v162
    %v164 = vpop.f32.mrf.mxu0
    %v165 = vadd.f32 %v80, %v164
    %166 = vdwg.mxu0
    %v167 = vmax.f32 %v159, 0.0
    %v168 = vmax.f32 %v165, 0.0
    %vm169 = vcmp.ne.f32.partialorder %v159, %v159
    %vm170 = vcmp.ne.f32.partialorder %v165, %v165
    %v171 = vadd.f32 %v159, 0.0
    %v172 = vadd.f32 %v165, 0.0
    %v173 = vand.u32 2147483647, %v159
    %v174 = vand.u32 2147483647, %v165
    %v175 = vsub.f32 0.0, %v173
    %v176 = vsub.f32 0.0, %v174
    %v177 = vmul.f32 %v175, 1.442695
    %v178 = vpow.pop %v177
    %v179 = vmul.f32 %v176, 1.442695
    %v180 = vpow.pop %v179
    %v181 = vadd.f32 %v178, 1.0
    %v182 = vlog2.pop %v181
    %v183 = vmul.f32 %v182, 0.6931472
    %v184 = vmul.f32 -0.5, %v178
    %v185 = vadd.f32 %v184, 1.0
    %v186 = vmul.f32 %v185, %v178
    %v187 = vand.u32 2147483647, %v178
    %vm188 = vcmp.lt.f32.partialorder %v187, 0.0004427343
    %v189 = vsel %vm188, %v186, %v183
    %v190 = vadd.f32 %v180, 1.0
    %v191 = vlog2.pop %v190
    %v192 = vmul.f32 %v191, 0.6931472
    %v193 = vmul.f32 -0.5, %v180
    %v194 = vadd.f32 %v193, 1.0
    %v195 = vmul.f32 %v194, %v180
    %v196 = vand.u32 2147483647, %v180
    %vm197 = vcmp.lt.f32.partialorder %v196, 0.0004427343
    %v198 = vsel %vm197, %v195, %v192
    %v199 = vadd.f32 %v167, %v189
    %v200 = vadd.f32 %v168, %v198
    %v201 = vsel %vm169, %v171, %v199
    %v202 = vsel %vm170, %v172, %v200
    %v203 = vld [vmem:[#allocation7] sm:$0xff]
    %v204 = vld [vmem:[#allocation7 + $0x8] sm:$0xff]
    %v205 = vmul.f32 %v203, %v201
    %v206 = vmul.f32 %v204, %v202
    %v207 = vadd.f32 %v157, %v205
    %v208 = vadd.f32 %v163, %v206
    %v209 = vlaneseq
    %v210 = vand.u32 %v209, 127
    %vm211 = vcmp.lt.s32.totalorder %v210, 8
    %v212 = vsel %vm211, %v207, -inf
    %v213 = vsel %vm211, %v208, -inf
    %214 = vmax.xlane.f32.xlu0 %v212
    %v215 = vpop.xlane.xlu0 %214
    %216 = vmax.xlane.f32.xlu0 %v213
    %v217 = vpop.xlane.xlu0 %216
    %vm218 = vcmp.eq.f32.partialorder %v212, %v215
    %vm219 = vcmp.eq.f32.partialorder %v213, %v217
    %v220 = vsel %vm218, %v210, 128
    %v221 = vsel %vm219, %v210, 128
    %v222 = vand.u32 %v220, 65535
    %v223 = vshra.s32 %v220, 16
    %v224 = vcvt.s32.f32 %v222
    %v225 = vcvt.s32.f32 %v223
    %226 = vmin.xlane.f32.xlu0 %v225
    %v227 = vpop.xlane.xlu0 %226
    %vm228 = vcmp.eq.f32.partialorder %v225, %v227
    %v229 = vsel %vm228, %v224, inf
    %230 = vmin.xlane.f32.xlu0 %v229
    %v231 = vpop.xlane.xlu0 %230
    %v232 = vcvt.f32.s32 %v231
    %v233 = vcvt.f32.s32 %v227
    %v234 = vshll.u32 %v233, 16
    %v235 = vadd.s32 %v234, %v232
    %v236 = vand.u32 %v221, 65535
    %v237 = vshra.s32 %v221, 16
    %v238 = vcvt.s32.f32 %v236
    %v239 = vcvt.s32.f32 %v237
    %240 = vmin.xlane.f32.xlu0 %v239
    %v241 = vpop.xlane.xlu0 %240
    %vm242 = vcmp.eq.f32.partialorder %v239, %v241
    %v243 = vsel %vm242, %v238, inf
    %244 = vmin.xlane.f32.xlu0 %v243
    %v245 = vpop.xlane.xlu0 %244
    %v246 = vcvt.f32.s32 %v245
    %v247 = vcvt.f32.s32 %v241
    %v248 = vshll.u32 %v247, 16
    %v249 = vadd.s32 %v248, %v246
    %vm250 = vcmp.eq.s32.totalorder %v210, %v235
    %vm251 = vcmp.eq.s32.totalorder %v210, %v249
    %v252 = vsel %vm250, -inf, %v212
    %v253 = vsel %vm251, -inf, %v213
    %254 = vmax.xlane.f32.xlu0 %v252
    %v255 = vpop.xlane.xlu0 %254
    %256 = vmax.xlane.f32.xlu0 %v253
    %v257 = vpop.xlane.xlu0 %256
    %vm258 = vcmp.eq.f32.partialorder %v252, %v255
    %vm259 = vcmp.eq.f32.partialorder %v253, %v257
    %v260 = vsel %vm258, %v210, 128
    %v261 = vsel %vm259, %v210, 128
    %v262 = vand.u32 %v260, 65535
    %v263 = vshra.s32 %v260, 16
    %v264 = vcvt.s32.f32 %v262
    %v265 = vcvt.s32.f32 %v263
    %266 = vmin.xlane.f32.xlu0 %v265
    %v267 = vpop.xlane.xlu0 %266
    %vm268 = vcmp.eq.f32.partialorder %v265, %v267
    %v269 = vsel %vm268, %v264, inf
    %270 = vmin.xlane.f32.xlu0 %v269
    %v271 = vpop.xlane.xlu0 %270
    %v272 = vcvt.f32.s32 %v271
    %v273 = vcvt.f32.s32 %v267
    %v274 = vshll.u32 %v273, 16
    %v275 = vadd.s32 %v274, %v272
    %v276 = vand.u32 %v261, 65535
    %v277 = vshra.s32 %v261, 16
    %v278 = vcvt.s32.f32 %v276
    %v279 = vcvt.s32.f32 %v277
    %280 = vmin.xlane.f32.xlu0 %v279
    %v281 = vpop.xlane.xlu0 %280
    %vm282 = vcmp.eq.f32.partialorder %v279, %v281
    %v283 = vsel %vm282, %v278, inf
    %284 = vmin.xlane.f32.xlu0 %v283
    %v285 = vpop.xlane.xlu0 %284
    %v286 = vcvt.f32.s32 %v285
    %v287 = vcvt.f32.s32 %v281
    %v288 = vshll.u32 %v287, 16
    %v289 = vadd.s32 %v288, %v286
    %vm290 = vcmp.eq.s32.totalorder %v210, %v275
    %vm291 = vcmp.eq.s32.totalorder %v210, %v289
    %v292 = vsel %vm290, -inf, %v252
    %v293 = vsel %vm291, -inf, %v253
    %vm294 = vcmask 7168
    %v295 = vsel %vm294, %v235, %v275
    %v296 = vsel %vm294, %v249, %v289
    %vm297 = vcmask 15360
    %298 = vst.msk [vmem:[%s5] sm:$0xff] %vm297, %v295
    %299 = vst.msk [vmem:[%s5 + $0x8] sm:$0xff] %vm297, %v296
    %vm300 = vcmp.lt.f32.partialorder %v292, %v212
    %vm301 = vcmp.lt.f32.partialorder %v293, %v213
    %v302 = vsel %vm300, %v212, -inf
    %v303 = vsel %vm301, %v213, -inf
    %304 = vmax.xlane.f32.xlu0 %v302
    %v305 = vpop.xlane.xlu0 %304
    %306 = vmax.xlane.f32.xlu0 %v303
    %v307 = vpop.xlane.xlu0 %306
    %v308 = vsub.f32 %v212, %v305
    %v309 = vsub.f32 %v213, %v307
    %v310 = vmul.f32 %v308, 1.442695
    %v311 = vpow.pop %v310
    %v312 = vmul.f32 %v309, 1.442695
    %v313 = vpow.pop %v312
    %v314 = vsel %vm300, %v311, 0.0
    %v315 = vsel %vm301, %v313, 0.0
    %316 = vadd.xlane.f32.xlu0 %v314
    %v317 = vpop.xlane.xlu0 %316
    %318 = vadd.xlane.f32.xlu0 %v315
    %v319 = vpop.xlane.xlu0 %318
    %v320 = vrcp.pop %v317
    %v321 = vmul.f32 %v314, %v320
    %v322 = vrcp.pop %v319
    %v323 = vmul.f32 %v315, %v322
    %324 = vst [vmem:[#allocation8] sm:$0xff] %v321
    %325 = vst [vmem:[#allocation8 + $0x8] sm:$0xff] %v323
    // Predicated region
    $region30: #{tpu_custom_call.1} parent=1 // pred_check
      _
    $region31: #{tpu_custom_call.1} parent=1 // pred_check_branch
      %327 = sbr.rel (0) target = $region33
    $region32: #{tpu_custom_call.1} parent=1 // pred_region
      %s329 = ssub.s32 256, 256
      %330 = vsyncadd [#allocation4], %s329
      %s331 = sshll.u32 [#allocation8], 4
      %s332 = int_to_ptr.vmem [resolvable:$true] %s331
      %337 = dma.vmem_to_hbm [thread:$0]  %s332, 256, %s4, [#allocation4], 128, 128, 8
    $region33: #{tpu_custom_call.1} parent=1 // pred_fallthru
      _
    // Predicated region
    $region34: #{tpu_custom_call.1} parent=1 // pred_check
      _
    $region35: #{tpu_custom_call.1} parent=1 // pred_check_branch
      %339 = sbr.rel (0) target = $region37
    $region36: #{tpu_custom_call.1} parent=1 // pred_region
      _
    $region37: #{tpu_custom_call.1} parent=1 // pred_fallthru
      _
    // Predicated region
    $region38: #{tpu_custom_call.1} parent=1 // pred_check
      _
    $region39: #{tpu_custom_call.1} parent=1 // pred_check_branch
      %341 = sbr.rel (0) target = $region41
    $region40: #{tpu_custom_call.1} parent=1 // pred_region
      %342 = dma.done [#allocation4], 256
    $region41: #{tpu_custom_call.1} parent=1 // pred_fallthru
      _
    // Predicated region
    $region42: #{tpu_custom_call.1} parent=1 // pred_check
      _
    $region43: #{tpu_custom_call.1} parent=1 // pred_check_branch
      %344 = sbr.rel (0) target = $region45
    $region44: #{tpu_custom_call.1} parent=1 // pred_region
      _
    $region45: #{tpu_custom_call.1} parent=1 // pred_fallthru
      _
    %345 = vsyncpa [#allocation3], 1
    %346 = vsyncpa [#allocation6], 1
    %347 = vsyncpa [#allocation4], 1

</llo_original>
